<compile_context>
chip_gen: v7x
topology: tpu7x:2x2x1
jax: 0.10.0
libtpu: 0.0.40
codegen_flags: <defaults>
</compile_context>

<pallas_src>
import numpy as np
import jax
import jax.numpy as jnp
from jax.experimental import pallas as pl
from jax.experimental.pallas import tpu as pltpu

H, W = 6, 6        # input spatial size implied by Linear(9, 2)
PH, PW = 3, 3      # spatial size after MaxPool2d(2, 2)
NPOOL = PH * PW    # 9 features into the fc layer
LANES = 128        # lane width of the packed conv1+pool operator (full vreg width)
GROUP = 32         # lane stride between the 4 pool-window candidate groups


# ---------------------------------------------------------------------------
# Parameter-setup glue (plain numpy) — deterministic operator construction
# ---------------------------------------------------------------------------
def _conv3x3_as_matrix(w, h, wd):
    """Dense (h*wd, h*wd) operator M such that x_flat @ M == conv2d(x, w, padding=1)_flat."""
    m = np.zeros((h * wd, h * wd), np.float32)
    for oi in range(h):
        for oj in range(wd):
            o = oi * wd + oj
            for di in range(3):
                for dj in range(3):
                    ii, jj = oi + di - 1, oj + dj - 1
                    if 0 <= ii < h and 0 <= jj < wd:
                        m[ii * wd + jj, o] += float(w[di, dj])
    return m


def _pool_select_matrices():
    """(4, 36, 9) 0/1 selection matrices; elementwise max of the 4 products == maxpool 2x2/2."""
    s = np.zeros((4, H * W, NPOOL), np.float32)
    for pi in range(PH):
        for pj in range(PW):
            o = pi * PW + pj
            for a in range(2):
                for b in range(2):
                    k = a * 2 + b
                    s[k, (2 * pi + a) * W + (2 * pj + b), o] = 1.0
    return s


def _build_packed_operators(w1, bias1, w2, bias2, wfc, bfc):
    """Fold conv1+pool-selection, conv2+fc, and all biases into 3 dense operands."""
    a1 = _conv3x3_as_matrix(w1, H, W)                 # (36, 36)
    a2 = _conv3x3_as_matrix(w2, PH, PW)               # (9, 9)
    s = _pool_select_matrices()                       # (4, 36, 9)

    # conv1 + pool-window selection, packed 4 groups x 32 lanes wide (rest zero).
    mp = np.zeros((H * W, LANES), np.float32)
    for k in range(4):
        mp[:, GROUP * k: GROUP * k + NPOOL] = a1 @ s[k]

    # conv2 + fc tail; rows 9..31 zero so the unused lanes of the max slab contribute nothing.
    w_tail9 = a2 @ wfc.T                              # (9, 2)
    wt = np.zeros((GROUP, 2), np.float32)
    wt[:NPOOL, :] = w_tail9

    # All biases folded:  out = max_k(x @ M_k) @ W_tail + b_final
    ones9 = np.ones((1, NPOOL), np.float32)
    b_final = bias1 * (ones9 @ w_tail9) + bias2 * (ones9 @ wfc.T) + bfc.reshape(1, 2)
    return mp, wt, b_final.astype(np.float32)


def init_params(key):
    ks = jax.random.split(key, 6)
    bound_conv = 1.0 / 3.0   # PyTorch default uniform bound: 1/sqrt(fan_in=1*3*3)
    bound_fc = 1.0 / 3.0     # 1/sqrt(in_features=9)
    w1 = jax.random.uniform(ks[0], (3, 3), jnp.float32, -bound_conv, bound_conv)
    bias1 = jax.random.uniform(ks[1], (), jnp.float32, -bound_conv, bound_conv)
    w2 = jax.random.uniform(ks[2], (3, 3), jnp.float32, -bound_conv, bound_conv)
    bias2 = jax.random.uniform(ks[3], (), jnp.float32, -bound_conv, bound_conv)
    wfc = jax.random.uniform(ks[4], (2, 9), jnp.float32, -bound_fc, bound_fc)
    bfc = jax.random.uniform(ks[5], (2,), jnp.float32, -bound_fc, bound_fc)

    mp, wt, bf = _build_packed_operators(
        np.asarray(w1), float(bias1), np.asarray(w2), float(bias2),
        np.asarray(wfc), np.asarray(bfc))

    return dict(
        mp=jnp.asarray(mp, jnp.bfloat16),    # (36, 128)  conv1 + pool selection (bf16 MXU path)
        wt=jnp.asarray(wt, jnp.bfloat16),    # (32, 2)    conv2 + fc tail (bf16 MXU path)
        bf=jnp.asarray(bf, jnp.float32),     # (1, 2)     folded biases (f32 add)
        # raw weights kept only for the numpy reference check
        w1=w1, bias1=bias1, w2=w2, bias2=bias2, wfc=wfc, bfc_raw=bfc,
    )


# ---------------------------------------------------------------------------
# Pallas kernel: 2 bf16 MXU matmuls + a 2-level f32 max tree per batch tile
# ---------------------------------------------------------------------------
def _cnn_toy_kernel(x_ref, m_ref, wt_ref, bf_ref, o_ref):
    # In-kernel bf16 cast (VPU work hidden under the DMA; no wrapper-side HBM pass).
    xb = x_ref[...].astype(jnp.bfloat16)
    # Fused conv1(3x3, pad=1) + 4x pool-window selection: one bf16 MXU push, f32 accumulate.
    y = jnp.dot(xb, m_ref[...], preferred_element_type=jnp.float32)     # (TB, 128) f32
    # MaxPool2d(2,2): elementwise max over the 4 candidate groups (32-lane stride).
    # Static lane slices + jnp.maximum; max kept in f32 (v5e VPU has no bf16 ALU).
    m01 = jnp.maximum(y[:, 0 * GROUP:1 * GROUP], y[:, 1 * GROUP:2 * GROUP])
    m23 = jnp.maximum(y[:, 2 * GROUP:3 * GROUP], y[:, 3 * GROUP:4 * GROUP])
    mx = jnp.maximum(m01, m23)                                           # (TB, 32) f32
    # Fused conv2(3x3, pad=1) + Linear(9, 2) + all biases; bf16 operands, f32 accumulate.
    out = jnp.dot(mx.astype(jnp.bfloat16), wt_ref[...],
                  preferred_element_type=jnp.float32) + bf_ref[...]
    o_ref[...] = out.astype(o_ref.dtype)


def _round_up(n, m):
    return ((n + m - 1) // m) * m


def _choose_tile(b, block_b):
    """Batch tile: big (amortize grid-step overhead), multiple of 8 unless it equals B,
    and >= 2 grid steps when the batch is big enough (dual-TC sharding on v7x)."""
    block_b = max(8, (block_b // 8) * 8)
    if b > block_b:
        return block_b
    if b >= 16:
        return _round_up((b + 1) // 2, 8)   # two (roughly equal) tiles
    return b                                # tiny batch: single full-array tile


def cnn_toy_forward(x_nchw, params, *, block_b=8192):
    """x_nchw: (B, 1, 6, 6) float. Returns (B, 2) float32 logits."""
    b = x_nchw.shape[0]
    # torch.flatten(x, 1) ordering: row-major over (C, H, W).  Reshape is free; the bf16
    # cast happens inside the kernel, and ragged batches are handled by Pallas' partial
    # last tile (OOB rows masked on write) — no wrapper-side astype/pad HBM passes.
    x_flat = x_nchw.reshape(b, H * W)

    tb = _choose_tile(b, block_b)
    grid = (b + tb - 1) // tb

    out = pl.pallas_call(
        _cnn_toy_kernel,
        grid=(grid,),
        in_specs=[
            pl.BlockSpec((tb, H * W), lambda i: (i, 0)),       # x: tiled over batch
            pl.BlockSpec((H * W, LANES), lambda i: (0, 0)),    # packed conv1+pool (resident)
            pl.BlockSpec((GROUP, 2), lambda i: (0, 0)),        # conv2+fc tail (resident)
            pl.BlockSpec((1, 2), lambda i: (0, 0)),            # folded bias (resident)
        ],
        out_specs=pl.BlockSpec((tb, 2), lambda i: (i, 0)),
        out_shape=jax.ShapeDtypeStruct((b, 2), jnp.float32),
        compiler_params=pltpu.CompilerParams(
            dimension_semantics=("parallel",),                 # dual-TC sharding on v7x
            # ~30 MiB peak at TB=8192 (double-buffered x/out blocks lane-padded to 128
            # + f32 intermediates); 48 MiB leaves headroom and fits v7x's 64 MiB VMEM.
            vmem_limit_bytes=48 * 1024 * 1024,
        ),
    )(x_flat, params["mp"], params["wt"], params["bf"])
    return out


# ---------------------------------------------------------------------------
# Pure-numpy reference (direct stencil conv / pool / fc) for verification
# ---------------------------------------------------------------------------
def reference_forward(x, p):
    x = np.asarray(x, np.float64)
    w1 = np.asarray(p["w1"], np.float64); b1 = float(p["bias1"])
    w2 = np.asarray(p["w2"], np.float64); b2 = float(p["bias2"])
    wfc = np.asarray(p["wfc"], np.float64); bfc = np.asarray(p["bfc_raw"], np.float64)

    def conv3x3(img, w, b):
        h, wd = img.shape
        pad = np.zeros((h + 2, wd + 2))
        pad[1:-1, 1:-1] = img
        out = np.zeros((h, wd))
        for i in range(h):
            for j in range(wd):
                out[i, j] = np.sum(pad[i:i + 3, j:j + 3] * w) + b
        return out

    outs = []
    for bi in range(x.shape[0]):
        c1 = conv3x3(x[bi, 0], w1, b1)
        p1 = c1.reshape(3, 2, 3, 2).max(axis=(1, 3))
        c2 = conv3x3(p1, w2, b2)
        outs.append(c2.reshape(-1) @ wfc.T + bfc)
    return np.stack(outs)


if __name__ == "__main__":
    key = jax.random.PRNGKey(0)
    pkey, xkey = jax.random.split(key)
    params = init_params(pkey)

    x = jax.random.normal(xkey, (2, 1, 6, 6), jnp.float32)   # NCHW, as in PyTorch

    out = jax.block_until_ready(cnn_toy_forward(x, params))

    ref = reference_forward(np.asarray(x), params)
    assert out.shape == (2, 2)
    # bf16 matmul operands (f32 accumulation) on both dots => loose tolerance vs float64.
    np.testing.assert_allclose(np.asarray(out), ref, rtol=3e-2, atol=3e-2)
    print("KERNEL_OK")
</pallas_src>

<mosaic_0001>
module attributes {stable_mosaic.version = 11 : i64} {
  func.func @_cnn_toy_kernel(%arg0: i32, %arg1: memref<2x36xf32, #tpu.memory_space<vmem>>, %arg2: memref<36x128xbf16, #tpu.memory_space<vmem>>, %arg3: memref<32x2xbf16, #tpu.memory_space<vmem>>, %arg4: memref<1x2xf32, #tpu.memory_space<vmem>>, %arg5: memref<2x2xf32, #tpu.memory_space<vmem>>) attributes {dimension_semantics = [#tpu.dimension_semantics<parallel>], iteration_bounds = array<i64: 1>, scalar_prefetch = 0 : i64, scratch_operands = 0 : i64, tpu.core_type = #tpu.core_type<tc>, window_params = [{transform_indices = @transform_0, window_bounds = array<i64: 2, 36>}, {pipeline_mode = #tpu.pipeline_mode<synchronous>, transform_indices = @transform_1, window_bounds = array<i64: 36, 128>}, {pipeline_mode = #tpu.pipeline_mode<synchronous>, transform_indices = @transform_2, window_bounds = array<i64: 32, 2>}, {pipeline_mode = #tpu.pipeline_mode<synchronous>, transform_indices = @transform_3, window_bounds = array<i64: 1, 2>}, {transform_indices = @transform_4, window_bounds = array<i64: 2, 2>}]} {
    %c0 = arith.constant 0 : index
    %c0_0 = arith.constant 0 : index
    %0 = vector.load %arg1[%c0, %c0_0] : memref<2x36xf32, #tpu.memory_space<vmem>>, vector<2x36xf32>
    %1 = arith.truncf %0 : vector<2x36xf32> to vector<2x36xbf16>
    %c0_1 = arith.constant 0 : index
    %c0_2 = arith.constant 0 : index
    %2 = vector.load %arg2[%c0_1, %c0_2] : memref<36x128xbf16, #tpu.memory_space<vmem>>, vector<36x128xbf16>
    %cst = arith.constant dense<0.000000e+00> : vector<2x128xf32>
    %3 = tpu.matmul %1, %2, %cst {dimension_numbers = #tpu.dot_dimension_numbers<[1], [0], [0], [1], [0, 0, 1, 1], [], []>} : vector<2x36xbf16>, vector<36x128xbf16>, vector<2x128xf32> -> vector<2x128xf32>
    %4 = vector.extract_strided_slice %3 {offsets = [0, 0], sizes = [2, 32], strides = [1, 1]} : vector<2x128xf32> to vector<2x32xf32>
    %5 = vector.extract_strided_slice %3 {offsets = [0, 32], sizes = [2, 32], strides = [1, 1]} : vector<2x128xf32> to vector<2x32xf32>
    %6 = arith.maximumf %4, %5 : vector<2x32xf32>
    %7 = vector.extract_strided_slice %3 {offsets = [0, 64], sizes = [2, 32], strides = [1, 1]} : vector<2x128xf32> to vector<2x32xf32>
    %8 = vector.extract_strided_slice %3 {offsets = [0, 96], sizes = [2, 32], strides = [1, 1]} : vector<2x128xf32> to vector<2x32xf32>
    %9 = arith.maximumf %7, %8 : vector<2x32xf32>
    %10 = arith.maximumf %6, %9 : vector<2x32xf32>
    %11 = arith.truncf %10 : vector<2x32xf32> to vector<2x32xbf16>
    %c0_3 = arith.constant 0 : index
    %c0_4 = arith.constant 0 : index
    %12 = vector.load %arg3[%c0_3, %c0_4] : memref<32x2xbf16, #tpu.memory_space<vmem>>, vector<32x2xbf16>
    %cst_5 = arith.constant dense<0.000000e+00> : vector<2x2xf32>
    %13 = tpu.matmul %11, %12, %cst_5 {dimension_numbers = #tpu.dot_dimension_numbers<[1], [0], [0], [1], [0, 0, 1, 1], [], []>} : vector<2x32xbf16>, vector<32x2xbf16>, vector<2x2xf32> -> vector<2x2xf32>
    %c0_6 = arith.constant 0 : index
    %c0_7 = arith.constant 0 : index
    %14 = vector.load %arg4[%c0_6, %c0_7] : memref<1x2xf32, #tpu.memory_space<vmem>>, vector<1x2xf32>
    %15 = vector.broadcast %14 : vector<1x2xf32> to vector<2x2xf32>
    %16 = arith.addf %13, %15 : vector<2x2xf32>
    %c0_8 = arith.constant 0 : index
    %c0_9 = arith.constant 0 : index
    %17 = vector.load %arg5[%c0_8, %c0_9] : memref<2x2xf32, #tpu.memory_space<vmem>>, vector<2x2xf32>
    tpu.vector_store %arg5[%c0_8, %c0_9], %16 {strides = array<i32>} : memref<2x2xf32, #tpu.memory_space<vmem>>, vector<2x2xf32>,
    return
  }
  func.func @transform_0(%arg0: i32) -> (i32, i32) {
    %c0_i32 = arith.constant 0 : i32
    %c0_i32_0 = arith.constant 0 : i32
    return %arg0, %c0_i32 : i32, i32
  }
  func.func @transform_1(%arg0: i32) -> (i32, i32) {
    %c0_i32 = arith.constant 0 : i32
    %c0_i32_0 = arith.constant 0 : i32
    %c0_i32_1 = arith.constant 0 : i32
    return %c0_i32, %c0_i32_0 : i32, i32
  }
  func.func @transform_2(%arg0: i32) -> (i32, i32) {
    %c0_i32 = arith.constant 0 : i32
    %c0_i32_0 = arith.constant 0 : i32
    %c0_i32_1 = arith.constant 0 : i32
    return %c0_i32, %c0_i32_0 : i32, i32
  }
  func.func @transform_3(%arg0: i32) -> (i32, i32) {
    %c0_i32 = arith.constant 0 : i32
    %c0_i32_0 = arith.constant 0 : i32
    %c0_i32_1 = arith.constant 0 : i32
    return %c0_i32, %c0_i32_0 : i32, i32
  }
  func.func @transform_4(%arg0: i32) -> (i32, i32) {
    %c0_i32 = arith.constant 0 : i32
    %c0_i32_0 = arith.constant 0 : i32
    return %arg0, %c0_i32 : i32, i32
  }
}

</mosaic_0001>

<llo_original>
// kernel: tpu_custom_call.1
$region0: #{tpu_custom_call.1}
  #allocation0 [shape = 'u32[]', space=smem, size = 0x4, offset = 0x4, fixed_abs, tag = 'smem constant byte address 0x4 - core index']
  #allocation1 [shape = 'u32[144,128]{1,0:T(1,128)}', space=vmem, size = 0x12000, scoped, tag = 'internal scratch']
  %s0 = inlined_call_operand.hbm [shape: f32[2,36], index: 0, kind: input, shape index: {}]
  %s1 = inlined_call_operand.vmem [shape: bf16[36,128], index: 1, kind: input, shape index: {}]
  %s2 = inlined_call_operand.vmem [shape: bf16[32,2], index: 2, kind: input, shape index: {}]
  %s3 = inlined_call_operand.vmem [shape: f32[1,2], index: 3, kind: input, shape index: {}]
  %s4 = inlined_call_operand.hbm [shape: f32[2,2], index: 4, kind: output, shape index: {}]
  %s5 = sld [smem:[#allocation0]]
  $region30: #{tpu_custom_call.1} parent=0
    _
  %s7 = ssub.s32 1, %s5
  %s8 = scalar_select 0, %s7, %s5
  $region1: #{tpu_custom_call.1} parent=0
    #allocation2 [shape = 'u8[1024]{0}', space=vmem, size = 0x400, scoped, tag = 'input window, operand 0, single buffered']
    #allocation3 [shape = 's32[1]{0}', space=sflag, size = 0x4, scoped, tag = 'scoped memory for tpu_custom_call.1']
    #allocation4 [shape = 's32[1]{0}', space=sflag, size = 0x4, scoped, tag = 'scoped memory for tpu_custom_call.1']
    #allocation5 [shape = 'u8[1024]{0}', space=vmem, size = 0x400, scoped, tag = 'output window, operand 0, single buffered']
    %9 = vsyncpa [#allocation3], 0
    %10 = vsyncpa [#allocation4], 0
    // Predicated region
    $region2: #{tpu_custom_call.1} parent=1 // pred_check
      _
    $region3: #{tpu_custom_call.1} parent=1 // pred_check_branch
      %12 = sbr.rel (0) target = $region5
    $region4: #{tpu_custom_call.1} parent=1 // pred_region
      %s14 = ssub.s32 32, 32
      %15 = vsyncadd [#allocation3], %s14
      %s17 = sshll.u32 [#allocation2], 4
      %s18 = int_to_ptr.vmem [resolvable:$true] %s17
      %20 = dma.hbm_to_vmem [thread:$0]  %s0, 32, %s18, [#allocation3]
    $region5: #{tpu_custom_call.1} parent=1 // pred_fallthru
      _
    // Predicated region
    $region6: #{tpu_custom_call.1} parent=1 // pred_check
      _
    $region7: #{tpu_custom_call.1} parent=1 // pred_check_branch
      %22 = sbr.rel (0) target = $region9
    $region8: #{tpu_custom_call.1} parent=1 // pred_region
      _
    $region9: #{tpu_custom_call.1} parent=1 // pred_fallthru
      _
    // Predicated region
    $region10: #{tpu_custom_call.1} parent=1 // pred_check
      _
    $region11: #{tpu_custom_call.1} parent=1 // pred_check_branch
      %24 = sbr.rel (0) target = $region13
    $region12: #{tpu_custom_call.1} parent=1 // pred_region
      _
    $region13: #{tpu_custom_call.1} parent=1 // pred_fallthru
      _
    // Predicated region
    $region14: #{tpu_custom_call.1} parent=1 // pred_check
      _
    $region15: #{tpu_custom_call.1} parent=1 // pred_check_branch
      %26 = sbr.rel (0) target = $region17
    $region16: #{tpu_custom_call.1} parent=1 // pred_region
      _
    $region17: #{tpu_custom_call.1} parent=1 // pred_fallthru
      _
    // Predicated region
    $region18: #{tpu_custom_call.1} parent=1 // pred_check
      _
    $region19: #{tpu_custom_call.1} parent=1 // pred_check_branch
      %28 = sbr.rel (0) target = $region21
    $region20: #{tpu_custom_call.1} parent=1 // pred_region
      %29 = dma.done [#allocation3], 32
    $region21: #{tpu_custom_call.1} parent=1 // pred_fallthru
      _
    %v31 = vld [vmem:[#allocation2] sm:$0x3]
    %v32 = vpack.c.bf16 %v31, %v31
    %v33 = vld [vmem:[%s1] sm:$0xf]
    %v34 = vld [vmem:[%s1 + $0x4] sm:$0xf]
    %v35 = vld [vmem:[%s1 + $0x8] sm:$0xf]
    %v36 = vld [vmem:[%s1 + $0xc] sm:$0xf]
    %v37 = vld [vmem:[%s1 + $0x10] sm:$0x3]
    %v43 = vunpack.c.l.b16 %v33
    %v44 = vunpack.c.l.b16 %v34
    %v45 = vunpack.c.l.b16 %v35
    %v46 = vunpack.c.l.b16 %v36
    %v47 = vunpack.c.l.b16 %v37
    %v48 = vpack.c.b16 %v44, %v43
    %v49 = vpack.c.b16 %v46, %v45
    %v50 = vpack.c.b16 %v47, %v47
    %vm53 = vcmask 293888
    %v55 = vsel %vm53, %v32, 0
    %vm57 = vcmask 1041408
    %v59 = vsel %vm57, %v50, 0
    %61 = vmatprep.subr.bf16.mxu0 0
    %62 = vmatpush1.bf16.msra.mxu0 %v48
    %63 = vmatprep.subr.bf16.mxu0 0
    %64 = vmatpush1.bf16.msra.mxu0 %v49
    %65 = vmatprep.subr.bf16.mxu0 0
    %66 = vmatpush1.bf16.msra.mxu0 %v59
    %67 = vmatprep.subr.bf16.mxu0 0
    %68 = vmatpush1.bf16.msra.mxu0 0
    %69 = vmatprep.subr.bf16.mxu0 0
    %70 = vmatpush1.bf16.msra.mxu0 0
    %71 = vmatprep.subr.bf16.mxu0 0
    %72 = vmatpush1.bf16.msra.mxu0 0
    %73 = vmatprep.subr.bf16.mxu0 0
    %74 = vmatpush1.bf16.msra.mxu0 0
    %75 = vmatprep.subr.bf16.mxu0 0
    %76 = vmatpush1.bf16.msra.mxu0 0
    %77 = vmatprep.subr.bf16.mxu0 0
    %78 = vmatpush1.bf16.msra.mxu0 0
    %79 = vmatprep.subr.bf16.mxu0 0
    %80 = vmatpush1.bf16.msra.mxu0 0
    %81 = vmatprep.subr.bf16.mxu0 0
    %82 = vmatpush1.bf16.msra.mxu0 0
    %83 = vmatprep.subr.bf16.mxu0 0
    %84 = vmatpush1.bf16.msra.mxu0 0
    %85 = vmatprep.subr.bf16.mxu0 0
    %86 = vmatpush1.bf16.msra.mxu0 0
    %87 = vmatprep.subr.bf16.mxu0 0
    %88 = vmatpush1.bf16.msra.mxu0 0
    %89 = vmatprep.subr.bf16.mxu0 0
    %90 = vmatpush1.bf16.msra.mxu0 0
    %91 = vmatprep.subr.bf16.mxu0 0
    %92 = vmatpush1.bf16.msra.mxu0 0
    %93 = vmatprep.mubr.bf16.mxu0 0
    %94 = vmatmul.mubr.bf16.gmra.mrb[0].mxu0 %v55
    %v95 = vpop.f32.mrb[0].mxu0
    %v96 = vadd.f32 0.0, %v95
    %v97 = vpop.f32.mrb[0].mxu0
    %v98 = vpop.f32.mrb[0].mxu0
    %v99 = vpop.f32.mrb[0].mxu0
    %100 = vdwg.mxu0
    %102 = vrot.lane.b32.xlu0 %v96, 96
    %v103 = vpop.permute.xlu0 %102
    %v105 = vmax.f32 %v96, %v103
    %107 = vrot.lane.b32.xlu0 %v105, 64
    %v108 = vpop.permute.xlu0 %107
    %v110 = vmax.f32 %v105, %v108
    %v111 = vpack.c.bf16 %v110, %v110
    %v112 = vld [vmem:[%s2] sm:$0xf]
    %v113 = vld [vmem:[%s2 + $0x4] sm:$0xf]
    %v114 = vld [vmem:[%s2 + $0x8] sm:$0xf]
    %v115 = vld [vmem:[%s2 + $0xc] sm:$0xf]
    %v116 = vld [vmem:[%s3] sm:$0x1]
    %v118 = vlaneseq
    %v119 = vshrl.u32 %v118, 7
    %v120 = vsub.s32 0, %v119
    %v121 = vrot.slane %v116, %v120
    %v127 = vunpack.c.l.b16 %v112
    %v128 = vunpack.c.l.b16 %v113
    %v129 = vunpack.c.l.b16 %v114
    %v130 = vunpack.c.l.b16 %v115
    %v131 = vpack.c.b16 %v128, %v127
    %v132 = vpack.c.b16 %v130, %v129
    %vm135 = vcmask 261120
    %v137 = vsel %vm135, %v111, 0
    %139 = vmatprep.subr.bf16.mxu0 0
    %140 = vmatpush1.bf16.msra.mxu0 %v131
    %141 = vmatprep.subr.bf16.mxu0 0
    %142 = vmatpush1.bf16.msra.mxu0 %v132
    %143 = vmatprep.subr.bf16.mxu0 0
    %144 = vmatpush1.bf16.msra.mxu0 0
    %145 = vmatprep.subr.bf16.mxu0 0
    %146 = vmatpush1.bf16.msra.mxu0 0
    %147 = vmatprep.subr.bf16.mxu0 0
    %148 = vmatpush1.bf16.msra.mxu0 0
    %149 = vmatprep.subr.bf16.mxu0 0
    %150 = vmatpush1.bf16.msra.mxu0 0
    %151 = vmatprep.subr.bf16.mxu0 0
    %152 = vmatpush1.bf16.msra.mxu0 0
    %153 = vmatprep.subr.bf16.mxu0 0
    %154 = vmatpush1.bf16.msra.mxu0 0
    %155 = vmatprep.subr.bf16.mxu0 0
    %156 = vmatpush1.bf16.msra.mxu0 0
    %157 = vmatprep.subr.bf16.mxu0 0
    %158 = vmatpush1.bf16.msra.mxu0 0
    %159 = vmatprep.subr.bf16.mxu0 0
    %160 = vmatpush1.bf16.msra.mxu0 0
    %161 = vmatprep.subr.bf16.mxu0 0
    %162 = vmatpush1.bf16.msra.mxu0 0
    %163 = vmatprep.subr.bf16.mxu0 0
    %164 = vmatpush1.bf16.msra.mxu0 0
    %165 = vmatprep.subr.bf16.mxu0 0
    %166 = vmatpush1.bf16.msra.mxu0 0
    %167 = vmatprep.subr.bf16.mxu0 0
    %168 = vmatpush1.bf16.msra.mxu0 0
    %169 = vmatprep.subr.bf16.mxu0 0
    %170 = vmatpush1.bf16.msra.mxu0 0
    %171 = vmatprep.mubr.bf16.mxu0 0
    %172 = vmatmul.mubr.bf16.gmra.mrb[0].mxu0 %v137
    %v173 = vpop.f32.mrb[0].mxu0
    %v174 = vadd.f32 %v121, %v173
    %v175 = vpop.f32.mrb[0].mxu0
    %v176 = vpop.f32.mrb[0].mxu0
    %v177 = vpop.f32.mrb[0].mxu0
    %178 = vdwg.mxu0
    %vm179 = vcmask 9216
    %180 = vst.msk [vmem:[#allocation5] sm:$0x3] %vm179, %v174
    // Predicated region
    $region22: #{tpu_custom_call.1} parent=1 // pred_check
      _
    $region23: #{tpu_custom_call.1} parent=1 // pred_check_branch
      %182 = sbr.rel (0) target = $region25
    $region24: #{tpu_custom_call.1} parent=1 // pred_region
      %s184 = ssub.s32 32, 32
      %185 = vsyncadd [#allocation4], %s184
      %s187 = sshll.u32 [#allocation5], 4
      %s188 = int_to_ptr.vmem [resolvable:$true] %s187
      %190 = dma.vmem_to_hbm [thread:$0]  %s188, 32, %s4, [#allocation4]
    $region25: #{tpu_custom_call.1} parent=1 // pred_fallthru
      _
    // Predicated region
    $region26: #{tpu_custom_call.1} parent=1 // pred_check
      _
    $region27: #{tpu_custom_call.1} parent=1 // pred_check_branch
      %192 = sbr.rel (0) target = $region29
    $region28: #{tpu_custom_call.1} parent=1 // pred_region
      %193 = dma.done [#allocation4], 32
    $region29: #{tpu_custom_call.1} parent=1 // pred_fallthru
      _
    %194 = vsyncpa [#allocation3], 1
    %195 = vsyncpa [#allocation4], 1

</llo_original>
